<compile_context>
chip_gen: v5e
topology: v5e:2x2
jax: 0.10.0
libtpu: 0.0.40
codegen_flags: <defaults>
</compile_context>

<pallas_src>
import jax
import jax.numpy as jnp
from jax.experimental import pallas as pl
from jax.experimental.pallas import tpu as pltpu


# Conservative padded/post-upcast VMEM budget for one grid step's working set
# (double-buffered input block + f32 temporaries).  48 MiB scoped limit leaves
# headroom on v7x's 64 MiB physical VMEM; v5e/v6e have 128 MiB.
_TARGET_FOOTPRINT_BYTES = 24 * 1024 * 1024
_VMEM_LIMIT_BYTES = 48 * 1024 * 1024
# Minimum grid steps when the batch allows: keeps the auto-pipeline fed
# (prefetch block i+1 while computing block i) and gives each v7x TensorCore
# >= ~4 steps when the "parallel" axis is sharded across both cores.
_MIN_GRID_STEPS = 8


def _pick_block_b(B, S, H, in_itemsize):
    """Batch rows per grid step, sized from the padded VMEM footprint."""
    pad_h = ((H + 127) // 128) * 128  # lane padding of the minor dim
    # Per-row VMEM cost: 2x (double-buffered) input block at its padded layout
    # + ~3 block-sized f32 temporaries created by the tanh/mul/reduce chain.
    row_cost = S * pad_h * (2 * in_itemsize + 3 * 4)
    cap_vmem = max(1, _TARGET_FOOTPRINT_BYTES // row_cost)
    cap_steps = pl.cdiv(B, _MIN_GRID_STEPS)  # keep >= _MIN_GRID_STEPS steps
    tb = min(cap_vmem, cap_steps, B)
    if tb >= 8:
        tb = (tb // 8) * 8          # sublane-aligned (TB, H) output blocks
    elif B > tb:
        tb = min(8, B)              # round up to the 8-row sublane minimum
    # Invariant: tb is a multiple of 8 or equals B (out_spec tiling rule).
    return max(1, min(tb, B))


def _default_cast_to_bf16():
    """bf16 input halves HBM traffic; enable only where it is known-good."""
    try:
        kind = jax.devices()[0].device_kind.lower()
    except Exception:
        return False
    # v6e / v7x have bf16 VPU/EUP paths; v5e and unknown chips stay f32.
    return ("v6" in kind) or ("v7" in kind)


def _attention_kernel(x_ref, w_ref, o_ref):
    # x_ref: (TB, S, H) block of the input (TB batch rows per grid step)
    # w_ref: (1, H) attention vector, grid-invariant (same block every step)
    # o_ref: (TB, H) output rows for this step
    w = w_ref[0, :].astype(jnp.float32)  # (H,)

    # A1 = sum_h tanh(x) * w  ->  (TB, S).
    # Deliberately NOT an MXU matmul (N=1 would waste the MXU); this lowers to
    # EUP tanh + VPU multiply + XLU lane reduce — slots that are otherwise idle
    # in a memory-bound kernel.  The f32 upcast happens inside the expression
    # (no full-block f32 copy is bound/materialized up front).
    a1 = jnp.sum(jnp.tanh(x_ref[...].astype(jnp.float32)) * w, axis=-1)

    # Numerically stable softmax over the sequence axis (PyTorch dim=1).
    m = jnp.max(a1, axis=-1, keepdims=True)
    e = jnp.exp(a1 - m)
    denom = jnp.sum(e, axis=-1, keepdims=True)
    # EUP approximate reciprocal + one Newton step on a tiny (TB, 1) vector:
    # keeps the divide off the VALU while retaining ~f32 accuracy.
    inv = pl.reciprocal(denom, approx=True)
    inv = inv * (2.0 - denom * inv)
    a2 = e * inv                          # (TB, S)

    # out = sum_s x[:, s, :] * A2[:, s]  ->  (TB, H), accumulated in f32.
    # Second streaming pass over x_ref (VMEM re-read, 3 vld/cycle — cheap).
    out = jnp.sum(x_ref[...].astype(jnp.float32) * a2[:, :, None], axis=1)
    o_ref[...] = out.astype(o_ref.dtype)


def attention_pallas(x, w, *, block_b=None, cast_to_bf16=None):
    """x: (B, S, H), w: (H,) -> (B, H).  Matches PyTorch Attention.forward.

    cast_to_bf16=None  -> auto (bf16 input on v6e/v7x, f32 elsewhere)
    cast_to_bf16=False -> keep the caller's dtype (bit-faithful f32 path)
    """
    B, S, H = x.shape
    out_dtype = x.dtype  # output keeps the caller's dtype even if x is downcast

    if cast_to_bf16 is None:
        cast_to_bf16 = _default_cast_to_bf16()
    if cast_to_bf16 and x.dtype == jnp.float32:
        x = x.astype(jnp.bfloat16)  # halve HBM read traffic (mem-bound kernel)

    if block_b is None:
        block_b = _pick_block_b(B, S, H, jnp.dtype(x.dtype).itemsize)
    grid = (pl.cdiv(B, block_b),)
    w2d = w.reshape(1, H).astype(jnp.float32)

    return pl.pallas_call(
        _attention_kernel,
        out_shape=jax.ShapeDtypeStruct((B, H), out_dtype),
        grid_spec=pl.GridSpec(
            grid=grid,
            in_specs=[
                pl.BlockSpec((block_b, S, H), lambda b: (b, 0, 0)),
                pl.BlockSpec((1, H), lambda b: (0, 0)),
            ],
            out_specs=pl.BlockSpec((block_b, H), lambda b: (b, 0)),
        ),
        compiler_params=pltpu.CompilerParams(
            dimension_semantics=("parallel",),
            vmem_limit_bytes=_VMEM_LIMIT_BYTES,
        ),
    )(x, w2d)


def attention_ref(x, w):
    """Pure-JAX reference mirroring the PyTorch forward."""
    a1 = jnp.einsum("bsh,h->bs", jnp.tanh(x), w)
    a2 = jax.nn.softmax(a1, axis=1)
    return jnp.sum(x * a2[:, :, None], axis=1)


if __name__ == "__main__":
    # Small shapes consistent with the module: batch=2, seq=8, hidden=32.
    B, S, H = 2, 8, 32
    key = jax.random.PRNGKey(0)
    kx, kw = jax.random.split(key)
    x = jax.random.normal(kx, (B, S, H), dtype=jnp.float32)
    # nn.Parameter(torch.zeros(hidden_dim)) in __init__; use a deterministic
    # non-trivial init so the kernel's softmax path is actually exercised.
    w = jax.random.normal(kw, (H,), dtype=jnp.float32) * 0.1

    ref = attention_ref(x, w)

    # 1) Bit-faithful f32 path (no bf16 downcast): tight tolerance.
    out = jax.block_until_ready(attention_pallas(x, w, cast_to_bf16=False))
    assert out.shape == (B, H)
    err = float(jnp.max(jnp.abs(out - ref)))
    assert jnp.allclose(out, ref, atol=1e-4, rtol=1e-4), f"max abs err = {err}"

    # 2) Default path (auto bf16 input on v6e/v7x): bandwidth-optimized, so
    #    allow bf16-level input truncation error; still f32 accumulation/output.
    out_auto = jax.block_until_ready(attention_pallas(x, w))
    assert out_auto.shape == (B, H)
    err_auto = float(jnp.max(jnp.abs(out_auto - ref)))
    assert jnp.allclose(out_auto, ref, atol=5e-2, rtol=5e-2), (
        f"max abs err (auto path) = {err_auto}")

    print("KERNEL_OK")
</pallas_src>

<mosaic_0001>
module attributes {stable_mosaic.version = 11 : i64} {
  func.func @_attention_kernel(%arg0: i32, %arg1: memref<2x8x32xf32, #tpu.memory_space<vmem>>, %arg2: memref<1x32xf32, #tpu.memory_space<vmem>>, %arg3: memref<2x32xf32, #tpu.memory_space<vmem>>) attributes {dimension_semantics = [#tpu.dimension_semantics<parallel>], iteration_bounds = array<i64: 1>, scalar_prefetch = 0 : i64, scratch_operands = 0 : i64, tpu.core_type = #tpu.core_type<tc>, window_params = [{transform_indices = @transform_0, window_bounds = array<i64: 2, 8, 32>}, {pipeline_mode = #tpu.pipeline_mode<synchronous>, transform_indices = @transform_1, window_bounds = array<i64: 1, 32>}, {transform_indices = @transform_2, window_bounds = array<i64: 2, 32>}]} {
    %c0 = arith.constant 0 : index
    %c0_0 = arith.constant 0 : index
    %0 = vector.load %arg2[%c0, %c0_0] : memref<1x32xf32, #tpu.memory_space<vmem>>, vector<1x32xf32>
    %1 = vector.shape_cast %0 : vector<1x32xf32> to vector<32xf32>
    %c0_1 = arith.constant 0 : index
    %c0_2 = arith.constant 0 : index
    %c0_3 = arith.constant 0 : index
    %2 = vector.load %arg1[%c0_1, %c0_2, %c0_3] : memref<2x8x32xf32, #tpu.memory_space<vmem>>, vector<2x8x32xf32>
    %3 = math.tanh %2 : vector<2x8x32xf32>
    %4 = vector.shape_cast %1 : vector<32xf32> to vector<1x1x32xf32>
    %5 = vector.broadcast %4 : vector<1x1x32xf32> to vector<2x8x32xf32>
    %6 = arith.mulf %3, %5 : vector<2x8x32xf32>
    %cst = arith.constant dense<0.000000e+00> : vector<2x8xf32>
    %7 = vector.multi_reduction <add>, %6, %cst [2] : vector<2x8x32xf32> to vector<2x8xf32>
    %cst_4 = arith.constant dense<0xFF800000> : vector<2xf32>
    %8 = vector.multi_reduction <maximumf>, %7, %cst_4 [1] : vector<2x8xf32> to vector<2xf32>
    %9 = vector.shape_cast %8 : vector<2xf32> to vector<2x1xf32>
    %10 = vector.broadcast %9 : vector<2x1xf32> to vector<2x8xf32>
    %11 = arith.subf %7, %10 : vector<2x8xf32>
    %12 = math.exp %11 : vector<2x8xf32>
    %cst_5 = arith.constant dense<0.000000e+00> : vector<2xf32>
    %13 = vector.multi_reduction <add>, %12, %cst_5 [1] : vector<2x8xf32> to vector<2xf32>
    %14 = vector.shape_cast %13 : vector<2xf32> to vector<2x1xf32>
    %15 = tpu.reciprocal %14 {approx = true} : vector<2x1xf32> -> vector<2x1xf32>
    %16 = arith.mulf %14, %15 : vector<2x1xf32>
    %cst_6 = arith.constant 2.000000e+00 : f32
    %17 = vector.broadcast %cst_6 : f32 to vector<2x1xf32>
    %18 = arith.subf %17, %16 : vector<2x1xf32>
    %19 = arith.mulf %15, %18 : vector<2x1xf32>
    %20 = vector.broadcast %19 : vector<2x1xf32> to vector<2x8xf32>
    %21 = arith.mulf %12, %20 : vector<2x8xf32>
    %c0_7 = arith.constant 0 : index
    %c0_8 = arith.constant 0 : index
    %c0_9 = arith.constant 0 : index
    %22 = vector.load %arg1[%c0_7, %c0_8, %c0_9] : memref<2x8x32xf32, #tpu.memory_space<vmem>>, vector<2x8x32xf32>
    %23 = vector.shape_cast %21 : vector<2x8xf32> to vector<2x8x1xf32>
    %24 = vector.broadcast %23 : vector<2x8x1xf32> to vector<2x8x32xf32>
    %25 = arith.mulf %22, %24 : vector<2x8x32xf32>
    %cst_10 = arith.constant dense<0.000000e+00> : vector<2x32xf32>
    %26 = vector.multi_reduction <add>, %25, %cst_10 [1] : vector<2x8x32xf32> to vector<2x32xf32>
    %c0_11 = arith.constant 0 : index
    %c0_12 = arith.constant 0 : index
    %27 = vector.load %arg3[%c0_11, %c0_12] : memref<2x32xf32, #tpu.memory_space<vmem>>, vector<2x32xf32>
    tpu.vector_store %arg3[%c0_11, %c0_12], %26 {strides = array<i32>} : memref<2x32xf32, #tpu.memory_space<vmem>>, vector<2x32xf32>,
    return
  }
  func.func @transform_0(%arg0: i32) -> (i32, i32, i32) {
    %c0_i32 = arith.constant 0 : i32
    %c0_i32_0 = arith.constant 0 : i32
    %c0_i32_1 = arith.constant 0 : i32
    return %arg0, %c0_i32, %c0_i32_0 : i32, i32, i32
  }
  func.func @transform_1(%arg0: i32) -> (i32, i32) {
    %c0_i32 = arith.constant 0 : i32
    %c0_i32_0 = arith.constant 0 : i32
    %c0_i32_1 = arith.constant 0 : i32
    return %c0_i32, %c0_i32_0 : i32, i32
  }
  func.func @transform_2(%arg0: i32) -> (i32, i32) {
    %c0_i32 = arith.constant 0 : i32
    %c0_i32_0 = arith.constant 0 : i32
    return %arg0, %c0_i32 : i32, i32
  }
}

</mosaic_0001>

<llo_original>
// kernel: tpu_custom_call.1
$region0: #{tpu_custom_call.1}
  #allocation0 [shape = 'u32[]', space=smem, size = 0x4, offset = 0x4, fixed_abs, tag = 'smem constant byte address 0x4 - core index']
  #allocation1 [shape = 'u32[72,128]{1,0:T(1,128)}', space=vmem, size = 0x9000, scoped, tag = 'internal scratch']
  %s0 = inlined_call_operand.hbm [shape: f32[2,8,32], index: 0, kind: input, shape index: {}]
  %s1 = inlined_call_operand.hbm [shape: f32[1,32], index: 1, kind: input, shape index: {}]
  %s2 = inlined_call_operand.hbm [shape: f32[2,32], index: 2, kind: output, shape index: {}]
  %s3 = sld [smem:[#allocation0]]
  $region26: #{tpu_custom_call.1} parent=0
    _
  %s5 = ssub.s32 1, %s3
  %s6 = scalar_select 0, %s5, %s3
  $region1: #{tpu_custom_call.1} parent=0
    #allocation2 [shape = 'u8[8192]{0}', space=vmem, size = 0x2000, scoped, tag = 'input window, operand 0, single buffered']
    #allocation3 [shape = 's32[1]{0}', space=sflag, size = 0x4, scoped, tag = 'scoped memory for tpu_custom_call.1']
    #allocation4 [shape = 's32[1]{0}', space=sflag, size = 0x4, scoped, tag = 'scoped memory for tpu_custom_call.1']
    #allocation5 [shape = 'u8[512]{0}', space=vmem, size = 0x400, scoped, tag = 'input window, operand 1, single buffered']
    #allocation6 [shape = 's32[1]{0}', space=sflag, size = 0x4, scoped, tag = 'scoped memory for tpu_custom_call.1']
    #allocation7 [shape = 'u8[1024]{0}', space=vmem, size = 0x400, scoped, tag = 'output window, operand 0, single buffered']
    %7 = vsyncpa [#allocation3], 0
    %8 = vsyncpa [#allocation6], 0
    %9 = vsyncpa [#allocation4], 0
    // Predicated region
    $region2: #{tpu_custom_call.1} parent=1 // pred_check
      _
    $region3: #{tpu_custom_call.1} parent=1 // pred_check_branch
      %11 = sbr.rel (0) target = $region5
    $region4: #{tpu_custom_call.1} parent=1 // pred_region
      %13 = vsyncadd [#allocation3], 0
      %s14 = sshll.u32 %s0, 4
      %s15 = int_to_ptr.hbm [resolvable:$true] %s14
      %s16 = sshll.u32 [#allocation2], 4
      %s17 = int_to_ptr.vmem [resolvable:$true] %s16
      %22 = dma.hbm_to_vmem [thread:$0]  %s15, 256, %s17, [#allocation3], 128, 128, 8
    $region5: #{tpu_custom_call.1} parent=1 // pred_fallthru
      _
    // Predicated region
    $region6: #{tpu_custom_call.1} parent=1 // pred_check
      _
    $region7: #{tpu_custom_call.1} parent=1 // pred_check_branch
      %24 = sbr.rel (0) target = $region9
    $region8: #{tpu_custom_call.1} parent=1 // pred_region
      %26 = vsyncadd [#allocation6], 0
      %s28 = sshll.u32 %s1, 4
      %s29 = int_to_ptr.hbm [resolvable:$true] %s28
      %s30 = sshll.u32 [#allocation5], 4
      %s31 = int_to_ptr.vmem [resolvable:$true] %s30
      %33 = dma.hbm_to_vmem [thread:$0]  %s29, 16, %s31, [#allocation6]
    $region9: #{tpu_custom_call.1} parent=1 // pred_fallthru
      _
    // Predicated region
    $region10: #{tpu_custom_call.1} parent=1 // pred_check
      _
    $region11: #{tpu_custom_call.1} parent=1 // pred_check_branch
      %35 = sbr.rel (0) target = $region13
    $region12: #{tpu_custom_call.1} parent=1 // pred_region
      %37 = dma.done [#allocation3], 256
    $region13: #{tpu_custom_call.1} parent=1 // pred_fallthru
      _
    // Predicated region
    $region14: #{tpu_custom_call.1} parent=1 // pred_check
      _
    $region15: #{tpu_custom_call.1} parent=1 // pred_check_branch
      %39 = sbr.rel (0) target = $region17
    $region16: #{tpu_custom_call.1} parent=1 // pred_region
      %41 = dma.done [#allocation6], 16
    $region17: #{tpu_custom_call.1} parent=1 // pred_fallthru
      _
    %v42 = vld [vmem:[#allocation5] sm:$0x1]
    %v43 = vld [vmem:[#allocation2] sm:$0xff]
    %v44 = vld [vmem:[#allocation2 + $0x8] sm:$0xff]
    %v45 = vtanh.pop %v43
    %v46 = vtanh.pop %v44
    %v48 = vperm.slane %v42, 0
    %v50 = vmul.f32 %v45, %v48
    %v51 = vmul.f32 %v46, %v48
    %vm52 = vcmask 261120
    %v53 = vsel %vm52, %v50, 0.0
    %54 = vadd.xlane.f32.xlu0 %v53
    %v55 = vpop.xlane.xlu0 %54
    %v56 = vsel %vm52, %v51, 0.0
    %57 = vadd.xlane.f32.xlu0 %v56
    %v58 = vpop.xlane.xlu0 %57
    %v61 = vlaneseq
    %v62 = vand.u32 %v61, 127
    %v63 = vperm.slane %v55, %v62
    %v64 = vperm.slane %v58, %v62
    %vm65 = vcmask 1041409
    %v66 = vsel %vm65, %v64, %v63
    %vm68 = vcmask 58368
    %v69 = vsel %vm68, %v66, -inf
    %70 = vmax.xlane.f32.xlu0 %v69
    %v71 = vpop.xlane.xlu0 %70
    %v73 = vperm.slane %v71, 0
    %v74 = vperm.slane %v71, 1
    %v77 = vsub.f32 %v55, %v73
    %v78 = vsub.f32 %v58, %v74
    %v79 = vmul.f32 %v77, 1.442695
    %v80 = vpow.pop %v79
    %v81 = vmul.f32 %v78, 1.442695
    %v82 = vpow.pop %v81
    %85 = vset.pattern.permute.xlu0 0
    %86 = vperm.xlu0 %85, %v80
    %v87 = vpop.permute.xlu0 %86
    %88 = vset.pattern.permute.xlu0 0
    %89 = vperm.xlu0 %88, %v82
    %v90 = vpop.permute.xlu0 %89
    %v91 = vperm.slane %v87, %v62
    %v92 = vperm.slane %v90, %v62
    %v93 = vsel %vm65, %v92, %v91
    %v95 = vsel %vm68, %v93, 0.0
    %96 = vadd.xlane.f32.xlu0 %v95
    %v97 = vpop.xlane.xlu0 %96
    %v98 = vrcp.pop %v97
    %v99 = vmul.f32 %v97, %v98
    %v100 = vsub.f32 2.0, %v99
    %v101 = vmul.f32 %v98, %v100
    %v103 = vperm.slane %v101, 0
    %v104 = vperm.slane %v101, 1
    %v107 = vmul.f32 %v80, %v103
    %v108 = vmul.f32 %v82, %v104
    %110 = vset.pattern.permute.xlu0 0
    %111 = vperm.xlu0 %110, %v107
    %v112 = vpop.permute.xlu0 %111
    %115 = vset.pattern.permute.xlu0 0
    %116 = vperm.xlu0 %115, %v108
    %v117 = vpop.permute.xlu0 %116
    %v119 = vmul.f32 %v43, %v112
    %v120 = vmul.f32 %v44, %v117
    %v121 = vsel %vm52, %v119, 0.0
    %v122 = vrot.slane %v121, 4
    %v123 = vadd.f32 %v121, %v122
    %v124 = vrot.slane %v123, 2
    %v125 = vadd.f32 %v123, %v124
    %v126 = vrot.slane %v125, 1
    %v127 = vadd.f32 %v125, %v126
    %v128 = vsel %vm52, %v120, 0.0
    %v129 = vrot.slane %v128, 4
    %v130 = vadd.f32 %v128, %v129
    %v131 = vrot.slane %v130, 2
    %v132 = vadd.f32 %v130, %v131
    %v133 = vrot.slane %v132, 1
    %v134 = vadd.f32 %v132, %v133
    %v137 = vsel %vm65, %v134, %v127
    %vm139 = vcmask 254976
    %140 = vst.msk [vmem:[#allocation7] sm:$0x3] %vm139, %v137
    // Predicated region
    $region18: #{tpu_custom_call.1} parent=1 // pred_check
      _
    $region19: #{tpu_custom_call.1} parent=1 // pred_check_branch
      %142 = sbr.rel (0) target = $region21
    $region20: #{tpu_custom_call.1} parent=1 // pred_region
      %144 = vsyncadd [#allocation4], 0
      %s146 = sshll.u32 [#allocation7], 4
      %s147 = int_to_ptr.vmem [resolvable:$true] %s146
      %s148 = sshll.u32 %s2, 4
      %s149 = int_to_ptr.hbm [resolvable:$true] %s148
      %151 = dma.vmem_to_hbm [thread:$0]  %s147, 32, %s149, [#allocation4]
    $region21: #{tpu_custom_call.1} parent=1 // pred_fallthru
      _
    // Predicated region
    $region22: #{tpu_custom_call.1} parent=1 // pred_check
      _
    $region23: #{tpu_custom_call.1} parent=1 // pred_check_branch
      %153 = sbr.rel (0) target = $region25
    $region24: #{tpu_custom_call.1} parent=1 // pred_region
      %155 = dma.done [#allocation4], 32
    $region25: #{tpu_custom_call.1} parent=1 // pred_fallthru
      _
    %156 = vsyncpa [#allocation3], 1
    %157 = vsyncpa [#allocation6], 1
    %158 = vsyncpa [#allocation4], 1

</llo_original>
